<compile_context>
chip_gen: v7x
topology: tpu7x:2x2x1
jax: 0.10.0
libtpu: 0.0.40
codegen_flags: <defaults>
</compile_context>

<pallas_src>
import functools
import math

import numpy as np
import jax
import jax.numpy as jnp
from jax import lax
from jax.experimental import pallas as pl
from jax.experimental.pallas import tpu as pltpu


def _conv3x3_gelu_kernel(x_ref, w_ref, b_ref, m_ref, o_ref, col_ref, *, H, W, Nb):
    # x_ref  : (Nb, Cin, H*W)   Nb batch elements, flattened spatial on lanes
    # w_ref  : (Cout, 9*Cin)    weights; K index = (kh*3 + kw)*Cin + ci
    # b_ref  : (Cout, 1)        bias
    # m_ref  : (2, 1, H*W)      column masks: [0] valid for dw=-1, [1] for dw=+1
    # o_ref  : (Nb, Cout, H*W)  output tile
    # col_ref: (9*Cin, Nb*H*W)  im2col scratch = RHS of the single fused matmul
    HW = H * W
    Cin = x_ref.shape[1]

    # ---- Build the im2col RHS.
    # Row (t*Cin + ci), column (n*HW + p) holds x[n, ci, p + s] (s = dh*W + dw)
    # when tap t is in-bounds for output pixel p, else 0.  Row-boundary
    # invalidity is handled by the copy range [lo, hi) + zeroed strips; column
    # wrap-around inside the range is removed by the precomputed masks.
    for n in range(Nb):
        dst0 = n * HW
        for kh in range(3):
            for kw in range(3):
                dh, dw = kh - 1, kw - 1
                t = kh * 3 + kw
                s = dh * W + dw
                lo = max(0, -s)          # first output pixel this tap can touch
                hi = HW - max(0, s)      # one past the last
                L = hi - lo
                val = x_ref[n, :, pl.ds(lo + s, L)]          # (Cin, L), in-bounds
                if dw == -1:
                    val = val * m_ref[0, :, pl.ds(lo, L)]    # zero column j == 0
                elif dw == 1:
                    val = val * m_ref[1, :, pl.ds(lo, L)]    # zero column j == W-1
                col_ref[pl.ds(t * Cin, Cin), pl.ds(dst0 + lo, L)] = val
                # Zero the uncovered row-boundary strip every step (cheap:
                # <= W+1 lanes) -- keeps the kernel correct even when the grid
                # axis is split across TensorCores with per-core scratch.
                if lo > 0:
                    col_ref[pl.ds(t * Cin, Cin), pl.ds(dst0, lo)] = jnp.zeros(
                        (Cin, lo), col_ref.dtype)
                if hi < HW:
                    col_ref[pl.ds(t * Cin, Cin), pl.ds(dst0 + hi, HW - hi)] = (
                        jnp.zeros((Cin, HW - hi), col_ref.dtype))

    # ---- Single fused MXU matmul: (Cout, 9*Cin) @ (9*Cin, Nb*HW), f32 accumulate.
    # Default matmul precision (bf16 MXU passes) matches the f32 reference within
    # the test tolerance; pass precision=lax.Precision.HIGHEST here if bit-tight
    # parity with an f32 conv is ever required.
    acc = jnp.dot(w_ref[...], col_ref[...], preferred_element_type=jnp.float32)
    acc = acc + b_ref[...]                        # (Cout, 1) broadcasts over lanes

    # Exact (erf-based) GELU -- torch.nn.GELU() default.
    out = 0.5 * acc * (1.0 + lax.erf(acc * (1.0 / math.sqrt(2.0))))
    out = out.astype(o_ref.dtype)
    for n in range(Nb):
        o_ref[n] = out[:, n * HW:(n + 1) * HW]    # wide, lane-dense store


def _pick_batch_block(N, Cin, Cout, HW, itemsize):
    """Images per grid step: VMEM-budgeted, but keep >= 2 grid blocks when N >= 2
    so both v7x TensorCores get work, and cap unrolling."""
    per_img = (2 * Cin + 2 * Cout + 9 * Cin) * HW * itemsize   # dbl-buf io + im2col
    budget = 40 * 1024 * 1024
    cap = max(1, int(budget // max(per_img, 1)))
    cap = min(cap, 8)                      # bound in-kernel unrolling
    if N >= 2:
        cap = min(cap, N // 2)             # >= 2 parallel blocks for v7x's 2 TCs
    nb = 1
    for d in range(1, min(cap, N) + 1):    # largest divisor of N under the cap
        if N % d == 0:
            nb = d
    return nb


@jax.jit
def encoder1_conv(x, weight, bias):
    """Conv2d(3x3, stride=1, padding=1, zeros) + exact GELU.
    x: (N, Cin, H, W), weight: (Cout, Cin, 3, 3), bias: (Cout,) -> (N, Cout, H, W)."""
    N, Cin, H, W = x.shape
    Cout = weight.shape[0]
    HW = H * W
    itemsize = jnp.dtype(x.dtype).itemsize

    Nb = _pick_batch_block(N, Cin, Cout, HW, itemsize)
    grid = N // Nb

    # Free reshape: merge trailing contiguous H, W dims (no transpose, no pad pass).
    x_flat = x.reshape(N, Cin, HW)

    # Weight as the matmul LHS; K ordered (kh, kw, ci) to match im2col row order.
    w2d = jnp.transpose(weight, (0, 2, 3, 1)).reshape(Cout, 9 * Cin)
    b2 = bias.reshape(Cout, 1)

    # Column-validity masks over the flattened spatial axis (host-time constants):
    # a dw=-1 tap must not read the previous row's last pixel at j=0; a dw=+1 tap
    # must not read past j=W-1.  Tiny (2, 1, HW) input; cheaper/safer than
    # in-kernel vector integer modulo.
    col = np.arange(HW, dtype=np.int64) % W
    m_np = np.stack([(col >= 1), (col <= W - 2)]).astype(np.float32).reshape(2, 1, HW)
    masks = jnp.asarray(m_np, dtype=x.dtype)

    # Per-step VMEM estimate -> scoped limit (cap at 56 MiB for v7x's 64 MiB VMEM).
    est = (2 * Nb * Cin * HW + 2 * Nb * Cout * HW + 9 * Cin * Nb * HW) * itemsize
    est += (Cout * 9 * Cin + Cout + 2 * HW) * itemsize + Cout * Nb * HW * 4
    vmem_limit = int(min(56 * 1024 * 1024, max(32 * 1024 * 1024, 2 * est)))

    kernel = functools.partial(_conv3x3_gelu_kernel, H=H, W=W, Nb=Nb)

    out_flat = pl.pallas_call(
        kernel,
        out_shape=jax.ShapeDtypeStruct((N, Cout, HW), x.dtype),
        grid_spec=pltpu.PrefetchScalarGridSpec(
            num_scalar_prefetch=0,
            grid=(grid,),
            in_specs=[
                pl.BlockSpec((Nb, Cin, HW), lambda g: (g, 0, 0)),
                pl.BlockSpec((Cout, 9 * Cin), lambda g: (0, 0)),
                pl.BlockSpec((Cout, 1), lambda g: (0, 0)),
                pl.BlockSpec((2, 1, HW), lambda g: (0, 0, 0)),
            ],
            out_specs=pl.BlockSpec((Nb, Cout, HW), lambda g: (g, 0, 0)),
            scratch_shapes=[pltpu.VMEM((9 * Cin, Nb * HW), x.dtype)],
        ),
        compiler_params=pltpu.CompilerParams(
            dimension_semantics=("parallel",),
            vmem_limit_bytes=vmem_limit,
        ),
    )(x_flat, w2d, b2, masks)

    # Free reshape back to NCHW.
    return out_flat.reshape(N, Cout, H, W)


def _reference(x_nchw, weight_oihw, bias):
    """Pure-JAX reference for sanity checking."""
    y = lax.conv_general_dilated(
        x_nchw.astype(jnp.float32),
        weight_oihw.astype(jnp.float32),
        window_strides=(1, 1),
        padding=((1, 1), (1, 1)),
        dimension_numbers=("NCHW", "OIHW", "NCHW"),
    )
    y = y + bias.astype(jnp.float32)[None, :, None, None]
    return jax.nn.gelu(y, approximate=False)


if __name__ == "__main__":
    # Small shapes consistent with the module's forward.
    N, in_ch, out_ch, H, W = 2, 4, 8, 16, 16

    key = jax.random.PRNGKey(0)
    kx, kw_key, kb = jax.random.split(key, 3)

    x = jax.random.normal(kx, (N, in_ch, H, W), dtype=jnp.float32)
    # Deterministic Conv2d-style init (uniform in +/- 1/sqrt(fan_in)).
    fan_in = in_ch * 3 * 3
    bound = 1.0 / math.sqrt(fan_in)
    weight = jax.random.uniform(
        kw_key, (out_ch, in_ch, 3, 3), dtype=jnp.float32, minval=-bound, maxval=bound
    )
    bias = jax.random.uniform(
        kb, (out_ch,), dtype=jnp.float32, minval=-bound, maxval=bound
    )

    out = jax.block_until_ready(encoder1_conv(x, weight, bias))

    ref = _reference(x, weight, bias)
    assert out.shape == (N, out_ch, H, W)
    assert jnp.allclose(out, ref, atol=1e-4, rtol=1e-4), float(
        jnp.max(jnp.abs(out - ref))
    )

    print("KERNEL_OK")
</pallas_src>

<mosaic_0001>
module attributes {stable_mosaic.version = 11 : i64} {
  func.func @_conv3x3_gelu_kernel(%arg0: i32, %arg1: memref<1x4x256xf32, #tpu.memory_space<vmem>>, %arg2: memref<8x36xf32, #tpu.memory_space<vmem>>, %arg3: memref<8x1xf32, #tpu.memory_space<vmem>>, %arg4: memref<2x1x256xf32, #tpu.memory_space<vmem>>, %arg5: memref<1x8x256xf32, #tpu.memory_space<vmem>>, %arg6: memref<36x256xf32, #tpu.memory_space<vmem>>) attributes {dimension_semantics = [#tpu.dimension_semantics<parallel>], iteration_bounds = array<i64: 2>, scalar_prefetch = 0 : i64, scratch_operands = 1 : i64, tpu.core_type = #tpu.core_type<tc>, window_params = [{transform_indices = @transform_0, window_bounds = array<i64: 1, 4, 256>}, {pipeline_mode = #tpu.pipeline_mode<synchronous>, transform_indices = @transform_1, window_bounds = array<i64: 8, 36>}, {pipeline_mode = #tpu.pipeline_mode<synchronous>, transform_indices = @transform_2, window_bounds = array<i64: 8, 1>}, {pipeline_mode = #tpu.pipeline_mode<synchronous>, transform_indices = @transform_3, window_bounds = array<i64: 2, 1, 256>}, {transform_indices = @transform_4, window_bounds = array<i64: 1, 8, 256>}]} {
    %c0 = arith.constant 0 : index
    %c0_0 = arith.constant 0 : index
    %c0_1 = arith.constant 0 : index
    %0 = vector.load %arg1[%c0, %c0_0, %c0_1] : memref<1x4x256xf32, #tpu.memory_space<vmem>>, vector<1x4x239xf32>
    %1 = vector.shape_cast %0 : vector<1x4x239xf32> to vector<4x239xf32>
    %c0_2 = arith.constant 0 : index
    %c0_3 = arith.constant 0 : index
    %c17 = arith.constant 17 : index
    %2 = vector.load %arg4[%c0_2, %c0_3, %c17] : memref<2x1x256xf32, #tpu.memory_space<vmem>>, vector<1x1x239xf32>
    %3 = vector.shape_cast %2 : vector<1x1x239xf32> to vector<1x239xf32>
    %4 = vector.broadcast %3 : vector<1x239xf32> to vector<4x239xf32>
    %5 = arith.mulf %1, %4 : vector<4x239xf32>
    %c0_4 = arith.constant 0 : index
    %c17_5 = arith.constant 17 : index
    %6 = vector.load %arg6[%c0_4, %c17_5] : memref<36x256xf32, #tpu.memory_space<vmem>>, vector<4x239xf32>
    tpu.vector_store %arg6[%c0_4, %c17_5], %5 {strides = array<i32>} : memref<36x256xf32, #tpu.memory_space<vmem>>, vector<4x239xf32>,
    %cst = arith.constant 0.000000e+00 : f32
    %7 = vector.broadcast %cst : f32 to vector<4x17xf32>
    %c0_6 = arith.constant 0 : index
    %c0_7 = arith.constant 0 : index
    %8 = vector.load %arg6[%c0_6, %c0_7] : memref<36x256xf32, #tpu.memory_space<vmem>>, vector<4x17xf32>
    tpu.vector_store %arg6[%c0_6, %c0_7], %7 {strides = array<i32>} : memref<36x256xf32, #tpu.memory_space<vmem>>, vector<4x17xf32>,
    %c0_8 = arith.constant 0 : index
    %c0_9 = arith.constant 0 : index
    %c0_10 = arith.constant 0 : index
    %9 = vector.load %arg1[%c0_8, %c0_9, %c0_10] : memref<1x4x256xf32, #tpu.memory_space<vmem>>, vector<1x4x240xf32>
    %10 = vector.shape_cast %9 : vector<1x4x240xf32> to vector<4x240xf32>
    %c4 = arith.constant 4 : index
    %c16 = arith.constant 16 : index
    %11 = vector.load %arg6[%c4, %c16] : memref<36x256xf32, #tpu.memory_space<vmem>>, vector<4x240xf32>
    tpu.vector_store %arg6[%c4, %c16], %10 {strides = array<i32>} : memref<36x256xf32, #tpu.memory_space<vmem>>, vector<4x240xf32>,
    %cst_11 = arith.constant 0.000000e+00 : f32
    %12 = vector.broadcast %cst_11 : f32 to vector<4x16xf32>
    %c4_12 = arith.constant 4 : index
    %c0_13 = arith.constant 0 : index
    %13 = vector.load %arg6[%c4_12, %c0_13] : memref<36x256xf32, #tpu.memory_space<vmem>>, vector<4x16xf32>
    tpu.vector_store %arg6[%c4_12, %c0_13], %12 {strides = array<i32>} : memref<36x256xf32, #tpu.memory_space<vmem>>, vector<4x16xf32>,
    %c0_14 = arith.constant 0 : index
    %c0_15 = arith.constant 0 : index
    %c0_16 = arith.constant 0 : index
    %14 = vector.load %arg1[%c0_14, %c0_15, %c0_16] : memref<1x4x256xf32, #tpu.memory_space<vmem>>, vector<1x4x241xf32>
    %15 = vector.shape_cast %14 : vector<1x4x241xf32> to vector<4x241xf32>
    %c1 = arith.constant 1 : index
    %c0_17 = arith.constant 0 : index
    %c15 = arith.constant 15 : index
    %16 = vector.load %arg4[%c1, %c0_17, %c15] : memref<2x1x256xf32, #tpu.memory_space<vmem>>, vector<1x1x241xf32>
    %17 = vector.shape_cast %16 : vector<1x1x241xf32> to vector<1x241xf32>
    %18 = vector.broadcast %17 : vector<1x241xf32> to vector<4x241xf32>
    %19 = arith.mulf %15, %18 : vector<4x241xf32>
    %c8 = arith.constant 8 : index
    %c15_18 = arith.constant 15 : index
    %20 = vector.load %arg6[%c8, %c15_18] : memref<36x256xf32, #tpu.memory_space<vmem>>, vector<4x241xf32>
    tpu.vector_store %arg6[%c8, %c15_18], %19 {strides = array<i32>} : memref<36x256xf32, #tpu.memory_space<vmem>>, vector<4x241xf32>,
    %cst_19 = arith.constant 0.000000e+00 : f32
    %21 = vector.broadcast %cst_19 : f32 to vector<4x15xf32>
    %c8_20 = arith.constant 8 : index
    %c0_21 = arith.constant 0 : index
    %22 = vector.load %arg6[%c8_20, %c0_21] : memref<36x256xf32, #tpu.memory_space<vmem>>, vector<4x15xf32>
    tpu.vector_store %arg6[%c8_20, %c0_21], %21 {strides = array<i32>} : memref<36x256xf32, #tpu.memory_space<vmem>>, vector<4x15xf32>,
    %c0_22 = arith.constant 0 : index
    %c0_23 = arith.constant 0 : index
    %c0_24 = arith.constant 0 : index
    %23 = vector.load %arg1[%c0_22, %c0_23, %c0_24] : memref<1x4x256xf32, #tpu.memory_space<vmem>>, vector<1x4x255xf32>
    %24 = vector.shape_cast %23 : vector<1x4x255xf32> to vector<4x255xf32>
    %c0_25 = arith.constant 0 : index
    %c0_26 = arith.constant 0 : index
    %c1_27 = arith.constant 1 : index
    %25 = vector.load %arg4[%c0_25, %c0_26, %c1_27] : memref<2x1x256xf32, #tpu.memory_space<vmem>>, vector<1x1x255xf32>
    %26 = vector.shape_cast %25 : vector<1x1x255xf32> to vector<1x255xf32>
    %27 = vector.broadcast %26 : vector<1x255xf32> to vector<4x255xf32>
    %28 = arith.mulf %24, %27 : vector<4x255xf32>
    %c12 = arith.constant 12 : index
    %c1_28 = arith.constant 1 : index
    %29 = vector.load %arg6[%c12, %c1_28] : memref<36x256xf32, #tpu.memory_space<vmem>>, vector<4x255xf32>
    tpu.vector_store %arg6[%c12, %c1_28], %28 {strides = array<i32>} : memref<36x256xf32, #tpu.memory_space<vmem>>, vector<4x255xf32>,
    %cst_29 = arith.constant 0.000000e+00 : f32
    %30 = vector.broadcast %cst_29 : f32 to vector<4x1xf32>
    %c12_30 = arith.constant 12 : index
    %c0_31 = arith.constant 0 : index
    %31 = vector.load %arg6[%c12_30, %c0_31] : memref<36x256xf32, #tpu.memory_space<vmem>>, vector<4x1xf32>
    tpu.vector_store %arg6[%c12_30, %c0_31], %30 {strides = array<i32>} : memref<36x256xf32, #tpu.memory_space<vmem>>, vector<4x1xf32>,
    %c0_32 = arith.constant 0 : index
    %c0_33 = arith.constant 0 : index
    %c0_34 = arith.constant 0 : index
    %32 = vector.load %arg1[%c0_32, %c0_33, %c0_34] : memref<1x4x256xf32, #tpu.memory_space<vmem>>, vector<1x4x256xf32>
    %33 = vector.shape_cast %32 : vector<1x4x256xf32> to vector<4x256xf32>
    %c16_35 = arith.constant 16 : index
    %c0_36 = arith.constant 0 : index
    %34 = vector.load %arg6[%c16_35, %c0_36] : memref<36x256xf32, #tpu.memory_space<vmem>>, vector<4x256xf32>
    tpu.vector_store %arg6[%c16_35, %c0_36], %33 {strides = array<i32>} : memref<36x256xf32, #tpu.memory_space<vmem>>, vector<4x256xf32>,
    %c0_37 = arith.constant 0 : index
    %c0_38 = arith.constant 0 : index
    %c1_39 = arith.constant 1 : index
    %35 = vector.load %arg1[%c0_37, %c0_38, %c1_39] : memref<1x4x256xf32, #tpu.memory_space<vmem>>, vector<1x4x255xf32>
    %36 = vector.shape_cast %35 : vector<1x4x255xf32> to vector<4x255xf32>
    %c1_40 = arith.constant 1 : index
    %c0_41 = arith.constant 0 : index
    %c0_42 = arith.constant 0 : index
    %37 = vector.load %arg4[%c1_40, %c0_41, %c0_42] : memref<2x1x256xf32, #tpu.memory_space<vmem>>, vector<1x1x255xf32>
    %38 = vector.shape_cast %37 : vector<1x1x255xf32> to vector<1x255xf32>
    %39 = vector.broadcast %38 : vector<1x255xf32> to vector<4x255xf32>
    %40 = arith.mulf %36, %39 : vector<4x255xf32>
    %c20 = arith.constant 20 : index
    %c0_43 = arith.constant 0 : index
    %41 = vector.load %arg6[%c20, %c0_43] : memref<36x256xf32, #tpu.memory_space<vmem>>, vector<4x255xf32>
    tpu.vector_store %arg6[%c20, %c0_43], %40 {strides = array<i32>} : memref<36x256xf32, #tpu.memory_space<vmem>>, vector<4x255xf32>,
    %cst_44 = arith.constant 0.000000e+00 : f32
    %42 = vector.broadcast %cst_44 : f32 to vector<4x1xf32>
    %c20_45 = arith.constant 20 : index
    %c255 = arith.constant 255 : index
    %43 = vector.load %arg6[%c20_45, %c255] : memref<36x256xf32, #tpu.memory_space<vmem>>, vector<4x1xf32>
    tpu.vector_store %arg6[%c20_45, %c255], %42 {strides = array<i32>} : memref<36x256xf32, #tpu.memory_space<vmem>>, vector<4x1xf32>,
    %c0_46 = arith.constant 0 : index
    %c0_47 = arith.constant 0 : index
    %c15_48 = arith.constant 15 : index
    %44 = vector.load %arg1[%c0_46, %c0_47, %c15_48] : memref<1x4x256xf32, #tpu.memory_space<vmem>>, vector<1x4x241xf32>
    %45 = vector.shape_cast %44 : vector<1x4x241xf32> to vector<4x241xf32>
    %c0_49 = arith.constant 0 : index
    %c0_50 = arith.constant 0 : index
    %c0_51 = arith.constant 0 : index
    %46 = vector.load %arg4[%c0_49, %c0_50, %c0_51] : memref<2x1x256xf32, #tpu.memory_space<vmem>>, vector<1x1x241xf32>
    %47 = vector.shape_cast %46 : vector<1x1x241xf32> to vector<1x241xf32>
    %48 = vector.broadcast %47 : vector<1x241xf32> to vector<4x241xf32>
    %49 = arith.mulf %45, %48 : vector<4x241xf32>
    %c24 = arith.constant 24 : index
    %c0_52 = arith.constant 0 : index
    %50 = vector.load %arg6[%c24, %c0_52] : memref<36x256xf32, #tpu.memory_space<vmem>>, vector<4x241xf32>
    tpu.vector_store %arg6[%c24, %c0_52], %49 {strides = array<i32>} : memref<36x256xf32, #tpu.memory_space<vmem>>, vector<4x241xf32>,
    %cst_53 = arith.constant 0.000000e+00 : f32
    %51 = vector.broadcast %cst_53 : f32 to vector<4x15xf32>
    %c24_54 = arith.constant 24 : index
    %c241 = arith.constant 241 : index
    %52 = vector.load %arg6[%c24_54, %c241] : memref<36x256xf32, #tpu.memory_space<vmem>>, vector<4x15xf32>
    tpu.vector_store %arg6[%c24_54, %c241], %51 {strides = array<i32>} : memref<36x256xf32, #tpu.memory_space<vmem>>, vector<4x15xf32>,
    %c0_55 = arith.constant 0 : index
    %c0_56 = arith.constant 0 : index
    %c16_57 = arith.constant 16 : index
    %53 = vector.load %arg1[%c0_55, %c0_56, %c16_57] : memref<1x4x256xf32, #tpu.memory_space<vmem>>, vector<1x4x240xf32>
    %54 = vector.shape_cast %53 : vector<1x4x240xf32> to vector<4x240xf32>
    %c28 = arith.constant 28 : index
    %c0_58 = arith.constant 0 : index
    %55 = vector.load %arg6[%c28, %c0_58] : memref<36x256xf32, #tpu.memory_space<vmem>>, vector<4x240xf32>
    tpu.vector_store %arg6[%c28, %c0_58], %54 {strides = array<i32>} : memref<36x256xf32, #tpu.memory_space<vmem>>, vector<4x240xf32>,
    %cst_59 = arith.constant 0.000000e+00 : f32
    %56 = vector.broadcast %cst_59 : f32 to vector<4x16xf32>
    %c28_60 = arith.constant 28 : index
    %c240 = arith.constant 240 : index
    %57 = vector.load %arg6[%c28_60, %c240] : memref<36x256xf32, #tpu.memory_space<vmem>>, vector<4x16xf32>
    tpu.vector_store %arg6[%c28_60, %c240], %56 {strides = array<i32>} : memref<36x256xf32, #tpu.memory_space<vmem>>, vector<4x16xf32>,
    %c0_61 = arith.constant 0 : index
    %c0_62 = arith.constant 0 : index
    %c17_63 = arith.constant 17 : index
    %58 = vector.load %arg1[%c0_61, %c0_62, %c17_63] : memref<1x4x256xf32, #tpu.memory_space<vmem>>, vector<1x4x239xf32>
    %59 = vector.shape_cast %58 : vector<1x4x239xf32> to vector<4x239xf32>
    %c1_64 = arith.constant 1 : index
    %c0_65 = arith.constant 0 : index
    %c0_66 = arith.constant 0 : index
    %60 = vector.load %arg4[%c1_64, %c0_65, %c0_66] : memref<2x1x256xf32, #tpu.memory_space<vmem>>, vector<1x1x239xf32>
    %61 = vector.shape_cast %60 : vector<1x1x239xf32> to vector<1x239xf32>
    %62 = vector.broadcast %61 : vector<1x239xf32> to vector<4x239xf32>
    %63 = arith.mulf %59, %62 : vector<4x239xf32>
    %c32 = arith.constant 32 : index
    %c0_67 = arith.constant 0 : index
    %64 = vector.load %arg6[%c32, %c0_67] : memref<36x256xf32, #tpu.memory_space<vmem>>, vector<4x239xf32>
    tpu.vector_store %arg6[%c32, %c0_67], %63 {strides = array<i32>} : memref<36x256xf32, #tpu.memory_space<vmem>>, vector<4x239xf32>,
    %cst_68 = arith.constant 0.000000e+00 : f32
    %65 = vector.broadcast %cst_68 : f32 to vector<4x17xf32>
    %c32_69 = arith.constant 32 : index
    %c239 = arith.constant 239 : index
    %66 = vector.load %arg6[%c32_69, %c239] : memref<36x256xf32, #tpu.memory_space<vmem>>, vector<4x17xf32>
    tpu.vector_store %arg6[%c32_69, %c239], %65 {strides = array<i32>} : memref<36x256xf32, #tpu.memory_space<vmem>>, vector<4x17xf32>,
    %c0_70 = arith.constant 0 : index
    %c0_71 = arith.constant 0 : index
    %67 = vector.load %arg2[%c0_70, %c0_71] : memref<8x36xf32, #tpu.memory_space<vmem>>, vector<8x36xf32>
    %c0_72 = arith.constant 0 : index
    %c0_73 = arith.constant 0 : index
    %68 = vector.load %arg6[%c0_72, %c0_73] : memref<36x256xf32, #tpu.memory_space<vmem>>, vector<36x256xf32>
    %cst_74 = arith.constant dense<0.000000e+00> : vector<8x256xf32>
    %69 = tpu.matmul %67, %68, %cst_74 {dimension_numbers = #tpu.dot_dimension_numbers<[1], [0], [0], [1], [0, 0, 1, 1], [], []>} : vector<8x36xf32>, vector<36x256xf32>, vector<8x256xf32> -> vector<8x256xf32>
    %c0_75 = arith.constant 0 : index
    %c0_76 = arith.constant 0 : index
    %70 = vector.load %arg3[%c0_75, %c0_76] : memref<8x1xf32, #tpu.memory_space<vmem>>, vector<8x1xf32>
    %71 = vector.broadcast %70 : vector<8x1xf32> to vector<8x256xf32>
    %72 = arith.addf %69, %71 : vector<8x256xf32>
    %cst_77 = arith.constant 5.000000e-01 : f32
    %73 = vector.broadcast %cst_77 : f32 to vector<8x256xf32>
    %74 = arith.mulf %73, %72 : vector<8x256xf32>
    %cst_78 = arith.constant 0.707106769 : f32
    %75 = vector.broadcast %cst_78 : f32 to vector<8x256xf32>
    %76 = arith.mulf %72, %75 : vector<8x256xf32>
    %77 = math.erf %76 : vector<8x256xf32>
    %cst_79 = arith.constant 1.000000e+00 : f32
    %78 = vector.broadcast %cst_79 : f32 to vector<8x256xf32>
    %79 = arith.addf %78, %77 : vector<8x256xf32>
    %80 = arith.mulf %74, %79 : vector<8x256xf32>
    %c0_80 = arith.constant 0 : index
    %c0_81 = arith.constant 0 : index
    %c0_82 = arith.constant 0 : index
    %81 = vector.load %arg5[%c0_80, %c0_81, %c0_82] : memref<1x8x256xf32, #tpu.memory_space<vmem>>, vector<1x8x256xf32>
    %82 = vector.shape_cast %81 : vector<1x8x256xf32> to vector<8x256xf32>
    %83 = vector.shape_cast %80 : vector<8x256xf32> to vector<1x8x256xf32>
    tpu.vector_store %arg5[%c0_80, %c0_81, %c0_82], %83 {strides = array<i32>} : memref<1x8x256xf32, #tpu.memory_space<vmem>>, vector<1x8x256xf32>,
    return
  }
  func.func @transform_0(%arg0: i32) -> (i32, i32, i32) {
    %c0_i32 = arith.constant 0 : i32
    %c0_i32_0 = arith.constant 0 : i32
    %c0_i32_1 = arith.constant 0 : i32
    return %arg0, %c0_i32, %c0_i32_0 : i32, i32, i32
  }
  func.func @transform_1(%arg0: i32) -> (i32, i32) {
    %c0_i32 = arith.constant 0 : i32
    %c0_i32_0 = arith.constant 0 : i32
    %c0_i32_1 = arith.constant 0 : i32
    return %c0_i32, %c0_i32_0 : i32, i32
  }
  func.func @transform_2(%arg0: i32) -> (i32, i32) {
    %c0_i32 = arith.constant 0 : i32
    %c0_i32_0 = arith.constant 0 : i32
    %c0_i32_1 = arith.constant 0 : i32
    return %c0_i32, %c0_i32_0 : i32, i32
  }
  func.func @transform_3(%arg0: i32) -> (i32, i32, i32) {
    %c0_i32 = arith.constant 0 : i32
    %c0_i32_0 = arith.constant 0 : i32
    %c0_i32_1 = arith.constant 0 : i32
    %c0_i32_2 = arith.constant 0 : i32
    return %c0_i32, %c0_i32_0, %c0_i32_1 : i32, i32, i32
  }
  func.func @transform_4(%arg0: i32) -> (i32, i32, i32) {
    %c0_i32 = arith.constant 0 : i32
    %c0_i32_0 = arith.constant 0 : i32
    %c0_i32_1 = arith.constant 0 : i32
    return %arg0, %c0_i32, %c0_i32_0 : i32, i32, i32
  }
}

</mosaic_0001>

<llo_original>
// kernel: encoder1_conv.1
$region0: #{encoder1_conv.1}
  #allocation0 [shape = 'u32[]', space=smem, size = 0x4, offset = 0x4, fixed_abs, tag = 'smem constant byte address 0x4 - core index']
  #allocation1 [shape = 'u32[144,128]{1,0:T(1,128)}', space=vmem, size = 0x12000, scoped, tag = 'internal scratch']
  #allocation2 [shape = 'f32[36,256]{1,0:T(8,128)}', space=vmem, size = 0xa000, scoped, tag = 'scratch operand']
  %s0 = inlined_call_operand.vmem [shape: f32[2,4,256], index: 0, kind: input, shape index: {}]
  %s1 = inlined_call_operand.vmem [shape: f32[8,36], index: 1, kind: input, shape index: {}]
  %s2 = inlined_call_operand.vmem [shape: f32[8,1], index: 2, kind: input, shape index: {}]
  %s3 = inlined_call_operand.vmem [shape: f32[2,1,256], index: 3, kind: input, shape index: {}]
  %s4 = inlined_call_operand.vmem [shape: f32[2,8,256], index: 4, kind: output, shape index: {}]
  %s5 = sld [smem:[#allocation0]]
  $region49: #{encoder1_conv.1} parent=0
    _
  %s7 = ssub.s32 1, %s5
  %s8 = scalar_select 0, %s7, %s5
  loop: start=0, step=1, limit=4
  $region2: #{encoder1_conv.1} parent=0 // loop_pre_header
    _
  $region3: #{encoder1_conv.1} parent=0 // loop_header
    %s10 = sphi 0, %s14
    %p11 = scmp.ge.s32.totalorder %s10, 4
    %s20 = sphi 0, %s22
    %s23 = sphi 0, %s20
    %s24 = sphi 0, %s23
    %s40 = sphi 0, %s24
    %s44 = sphi 0, %s44
    %s46 = sphi 0, %s44
    %s47 = sphi 0, %s46
    %s61 = sphi 0, %s47
    %s65 = sphi 0, %s65
    %s67 = sphi 0, %s65
    %s68 = sphi 0, %s67
    %s82 = sphi 0, %s68
    %s86 = sphi 0, %s86
    %s88 = sphi 0, %s86
    %s89 = sphi 0, %s88
    %s103 = sphi 0, %s89
    %s109 = sphi 0, %s111
    %s112 = sphi 0, %s109
    %s113 = sphi 0, %s112
    %s129 = sphi 0, %s113
  $region4: #{encoder1_conv.1} parent=0 // loop_header_branch
    %13 = sbr.rel (%p11) target = $region8
  $region5: #{encoder1_conv.1} parent=0 // loop_body
    %s15 = ssub.s32 %s10, 1
    %s16 = ssub.s32 %s10, 2
    %s17 = sadd.s32 %s10, 1
    %s18 = ssub.s32 %s10, %s17
    %p19 = scmp.eq.s32.totalorder %s18, 0
    %s21 = sadd.s32 %s20, 1
    %s22 = scalar_select %p19, %s20, %s21
    %p25 = pneg %p19
    %p26 = scmp.eq.s32.totalorder %s10, 1
    %p27 = por %p25, %p26
    %p28 = scmp.ne.s32.totalorder %s20, %s23
    %p29 = scmp.eq.s32.totalorder %s10, 0
    %p30 = por %p28, %p29
    %p31 = scmp.ne.s32.totalorder %s20, %s23
    %p32 = scmp.eq.s32.totalorder %s15, 1
    %p33 = por %p31, %p32
    %p34 = scmp.ne.s32.totalorder %s23, %s24
    %p35 = scmp.eq.s32.totalorder %s15, 0
    %p36 = por %p34, %p35
    %p37 = scmp.ne.s32.totalorder %s23, %s24
    %p38 = scmp.eq.s32.totalorder %s16, 1
    %p39 = por %p37, %p38
    %p41 = scmp.ne.s32.totalorder %s24, %s40
    %p42 = scmp.eq.s32.totalorder %s16, 0
    %p43 = por %p41, %p42
    %s45 = sadd.s32 %s44, 1
    %p48 = scmp.eq.s32.totalorder %s10, 1
    %p49 = scmp.ne.s32.totalorder %s44, %s46
    %p50 = scmp.eq.s32.totalorder %s10, 0
    %p51 = por %p49, %p50
    %p52 = scmp.ne.s32.totalorder %s44, %s46
    %p53 = scmp.eq.s32.totalorder %s15, 1
    %p54 = por %p52, %p53
    %p55 = scmp.ne.s32.totalorder %s46, %s47
    %p56 = scmp.eq.s32.totalorder %s15, 0
    %p57 = por %p55, %p56
    %p58 = scmp.ne.s32.totalorder %s46, %s47
    %p59 = scmp.eq.s32.totalorder %s16, 1
    %p60 = por %p58, %p59
    %p62 = scmp.ne.s32.totalorder %s47, %s61
    %p63 = scmp.eq.s32.totalorder %s16, 0
    %p64 = por %p62, %p63
    %s66 = sadd.s32 %s65, 1
    %p69 = scmp.eq.s32.totalorder %s10, 1
    %p70 = scmp.ne.s32.totalorder %s65, %s67
    %p71 = scmp.eq.s32.totalorder %s10, 0
    %p72 = por %p70, %p71
    %p73 = scmp.ne.s32.totalorder %s65, %s67
    %p74 = scmp.eq.s32.totalorder %s15, 1
    %p75 = por %p73, %p74
    %p76 = scmp.ne.s32.totalorder %s67, %s68
    %p77 = scmp.eq.s32.totalorder %s15, 0
    %p78 = por %p76, %p77
    %p79 = scmp.ne.s32.totalorder %s67, %s68
    %p80 = scmp.eq.s32.totalorder %s16, 1
    %p81 = por %p79, %p80
    %p83 = scmp.ne.s32.totalorder %s68, %s82
    %p84 = scmp.eq.s32.totalorder %s16, 0
    %p85 = por %p83, %p84
    %s87 = sadd.s32 %s86, 1
    %p90 = scmp.eq.s32.totalorder %s10, 1
    %p91 = scmp.ne.s32.totalorder %s86, %s88
    %p92 = scmp.eq.s32.totalorder %s10, 0
    %p93 = por %p91, %p92
    %p94 = scmp.ne.s32.totalorder %s86, %s88
    %p95 = scmp.eq.s32.totalorder %s15, 1
    %p96 = por %p94, %p95
    %p97 = scmp.ne.s32.totalorder %s88, %s89
    %p98 = scmp.eq.s32.totalorder %s15, 0
    %p99 = por %p97, %p98
    %p100 = scmp.ne.s32.totalorder %s88, %s89
    %p101 = scmp.eq.s32.totalorder %s16, 1
    %p102 = por %p100, %p101
    %p104 = scmp.ne.s32.totalorder %s89, %s103
    %p105 = scmp.eq.s32.totalorder %s16, 0
    %p106 = por %p104, %p105
    %s107 = ssub.s32 %s10, %s17
    %p108 = scmp.eq.s32.totalorder %s107, 0
    %s110 = sadd.s32 %s109, 1
    %s111 = scalar_select %p108, %s109, %s110
    %p114 = pneg %p108
    %p115 = scmp.eq.s32.totalorder %s10, 1
    %p116 = por %p114, %p115
    %p117 = scmp.ne.s32.totalorder %s109, %s112
    %p118 = scmp.eq.s32.totalorder %s10, 0
    %p119 = por %p117, %p118
    %p120 = scmp.ne.s32.totalorder %s109, %s112
    %p121 = scmp.eq.s32.totalorder %s15, 1
    %p122 = por %p120, %p121
    %p123 = scmp.ne.s32.totalorder %s112, %s113
    %p124 = scmp.eq.s32.totalorder %s15, 0
    %p125 = por %p123, %p124
    %p126 = scmp.ne.s32.totalorder %s112, %s113
    %p127 = scmp.eq.s32.totalorder %s16, 1
    %p128 = por %p126, %p127
    %p130 = scmp.ne.s32.totalorder %s113, %s129
    %p131 = scmp.eq.s32.totalorder %s16, 0
    %p132 = por %p130, %p131
    %p133 = scmp.le.s32.totalorder 1, %s10
    %p134 = scmp.lt.s32.totalorder %s10, 3
    %p135 = pnand %p133, %p134
    %p136 = pneg %p135
    // Predicated region
    $region9: #{encoder1_conv.1} parent=5 // pred_check
      _
    $region10: #{encoder1_conv.1} parent=5 // pred_check_branch
      %138 = sbr.rel (%p135) target = $region12
    $region11: #{encoder1_conv.1} parent=5 // pred_region
      %s139 = ssub.s32 %s10, 1
      // Predicated region
      $region13: #{encoder1_conv.1} parent=11 // pred_check
        %p140 = pneg %p57
      $region14: #{encoder1_conv.1} parent=11 // pred_check_branch
        %142 = sbr.rel (%p140) target = $region16
      $region15: #{encoder1_conv.1} parent=11 // pred_region
        _
      $region16: #{encoder1_conv.1} parent=11 // pred_fallthru
        _
      // Predicated region
      $region17: #{encoder1_conv.1} parent=11 // pred_check
        %p143 = pneg %p78
      $region18: #{encoder1_conv.1} parent=11 // pred_check_branch
        %145 = sbr.rel (%p143) target = $region20
      $region19: #{encoder1_conv.1} parent=11 // pred_region
        _
      $region20: #{encoder1_conv.1} parent=11 // pred_fallthru
        _
      // Predicated region
      $region21: #{encoder1_conv.1} parent=11 // pred_check
        %p146 = pneg %p99
      $region22: #{encoder1_conv.1} parent=11 // pred_check_branch
        %148 = sbr.rel (%p146) target = $region24
      $region23: #{encoder1_conv.1} parent=11 // pred_region
        _
      $region24: #{encoder1_conv.1} parent=11 // pred_fallthru
        _
    $region12: #{encoder1_conv.1} parent=5 // pred_fallthru
      _
    %p149 = scmp.lt.s32.totalorder %s10, 2
    // Predicated region
    $region25: #{encoder1_conv.1} parent=5 // pred_check
      %p150 = pneg %p149
    $region26: #{encoder1_conv.1} parent=5 // pred_check_branch
      %152 = sbr.rel (%p150) target = $region28
    $region27: #{encoder1_conv.1} parent=5 // pred_region
      // Predicated region
      $region29: #{encoder1_conv.1} parent=27 // pred_check
        %p153 = pneg %p30
      $region30: #{encoder1_conv.1} parent=27 // pred_check_branch
        %155 = sbr.rel (%p153) target = $region32
      $region31: #{encoder1_conv.1} parent=27 // pred_region
        %p156 = scmp.lt.s32.totalorder %s10, 1
        %s157 = scalar_select %p156, %s10, 1
        %s158 = smul.addr %s157, 2
        %s159 = smul.addr %s158, 4
        %s160 = scalar_lea.vmem %s0, %s159
      $region32: #{encoder1_conv.1} parent=27 // pred_fallthru
        _
    $region28: #{encoder1_conv.1} parent=5 // pred_fallthru
      _
    %p161 = scmp.le.s32.totalorder 1, %s10
    %p162 = scmp.lt.s32.totalorder %s10, 3
    %p163 = pnand %p161, %p162
    %p164 = pneg %p163
    // Predicated region
    $region33: #{encoder1_conv.1} parent=5 // pred_check
      _
    $region34: #{encoder1_conv.1} parent=5 // pred_check_branch
      %166 = sbr.rel (%p163) target = $region36
    $region35: #{encoder1_conv.1} parent=5 // pred_region
      %s167 = ssub.s32 %s10, 1
      %p168 = scmp.lt.s32.totalorder %s15, 1
      %s169 = scalar_select %p168, %s15, 1
      %s170 = smul.addr %s169, 2
      %s171 = smul.addr %s170, 4
      %s172 = scalar_lea.vmem %s0, %s171
      %p173 = pneg %p36
      %p174 = pneg %p33
      %p175 = pneg %p57
      %p176 = pneg %p54
      %p177 = pneg %p78
      %p178 = pneg %p75
      %p179 = pneg %p99
      %p180 = pneg %p96
      %p181 = pneg %p125
      %p182 = pneg %p122
      %p183 = scmp.lt.s32.totalorder %s15, 1
      %s184 = scalar_select %p183, %s15, 1
      %s185 = smul.addr %s184, 2
      %s186 = smul.addr %s185, 8
      %s187 = scalar_lea.vmem %s4, %s186
      %p188 = scmp.lt.s32.totalorder %s15, 1
      %s189 = scalar_select %p188, %s15, 1
      %s190 = smul.addr %s189, 2
      %s191 = smul.addr %s190, 4
      %s192 = scalar_lea.vmem %s0, %s191
      %p193 = scmp.lt.s32.totalorder %s15, 1
      %s194 = scalar_select %p193, %s15, 1
      %s195 = smul.addr %s194, 2
      %s196 = smul.addr %s195, 8
      %s197 = scalar_lea.vmem %s4, %s196
      %v198 = vld [vmem:[%s192] sm:$0xff]
      %v199 = vld [vmem:[%s3] sm:$0x3]
      %v201 = vlaneseq
      %v202 = vshrl.u32 %v201, 7
      %v203 = vsub.s32 0, %v202
      %v204 = vrot.slane %v199, %v203
      %v205 = vlaneseq
      %v206 = vshrl.u32 %v205, 7
      %v207 = vsub.s32 1, %v206
      %v208 = vrot.slane %v199, %v207
      %v209 = vcombine.low %v204, %v208
      %210 = vrot.lane.b32.xlu0 %v209, 111
      %v211 = vpop.permute.xlu0 %210
      %v212 = vrot.slane %v211, 4
      %vm213 = vcmask 908288
      %v214 = vsel %vm213, %v211, %v212
      %v216 = vmul.f32 %v198, %v214
      %v218 = vcombine.high %v216, %v216
      %219 = vrot.lane.b32.xlu0 %v216, 17
      %v220 = vpop.permute.xlu0 %219
      %221 = vrot.lane.b32.xlu0 %v218, 17
      %v222 = vpop.permute.xlu0 %221
      %vm223 = vcmask 138240
      %v224 = vsel %vm223, %v220, %v222
      %vm227 = vcmask 1043592
      %228 = vst.msk [vmem:[#allocation2] sm:$0xf] %vm227, %v220
      %229 = vst [vmem:[#allocation2 + $0x8] sm:$0xf] %v224
      %vm230 = vcmask 134144
      %231 = vst.msk [vmem:[#allocation2] sm:$0xf] %vm230, 0.0
      %v232 = vld [vmem:[%s192] sm:$0xff]
      %v234 = vcombine.low %v232, %v232
      %235 = vrot.lane.b32.xlu0 %v234, 16
      %v236 = vpop.permute.xlu0 %235
      %237 = vrot.lane.b32.xlu0 %v232, 16
      %v238 = vpop.permute.xlu0 %237
      %vm239 = vcmask 130048
      %v240 = vsel %vm239, %v236, %v238
      %vm243 = vcmask 1047684
      %244 = vst.msk [vmem:[#allocation2] sm:$0xf0] %vm243, %v236
      %245 = vst [vmem:[#allocation2 + $0x8] sm:$0xf0] %v240
      %vm246 = vcmask 130052
      %247 = vst.msk [vmem:[#allocation2] sm:$0xf0] %vm246, 0.0
      %v248 = vld [vmem:[%s192] sm:$0xff]
      %s249 = scalar_lea.vmem %s3, 2
      %v250 = vld [vmem:[%s249] sm:$0x3]
      %v252 = vlaneseq
      %v253 = vshrl.u32 %v252, 7
      %v254 = vsub.s32 0, %v253
      %v255 = vrot.slane %v250, %v254
      %v256 = vlaneseq
      %v257 = vshrl.u32 %v256, 7
      %v258 = vsub.s32 1, %v257
      %v259 = vrot.slane %v250, %v258
      %v260 = vcombine.low %v255, %v259
      %261 = vrot.lane.b32.xlu0 %v260, 113
      %v262 = vpop.permute.xlu0 %261
      %v263 = vrot.slane %v262, 4
      %vm264 = vcmask 924672
      %v265 = vsel %vm264, %v262, %v263
      %v267 = vmul.f32 %v248, %v265
      %v269 = vcombine.high %v267, %v267
      %270 = vrot.lane.b32.xlu0 %v267, 15
      %v271 = vpop.permute.xlu0 %270
      %272 = vrot.lane.b32.xlu0 %v269, 15
      %v273 = vpop.permute.xlu0 %272
      %vm274 = vcmask 121856
      %v275 = vsel %vm274, %v271, %v273
      %vm278 = vcmask 1043576
      %279 = vst.msk [vmem:[#allocation2 + $0x10] sm:$0xf] %vm278, %v271
      %280 = vst [vmem:[#allocation2 + $0x18] sm:$0xf] %v275
      %vm281 = vcmask 117760
      %282 = vst.msk [vmem:[#allocation2 + $0x10] sm:$0xf] %vm281, 0.0
      %v283 = vld [vmem:[%s192] sm:$0xff]
      %v284 = vld [vmem:[%s3] sm:$0x3]
      %v286 = vlaneseq
      %v287 = vshrl.u32 %v286, 7
      %v288 = vsub.s32 0, %v287
      %v289 = vrot.slane %v284, %v288
      %v290 = vlaneseq
      %v291 = vshrl.u32 %v290, 7
      %v292 = vsub.s32 1, %v291
      %v293 = vrot.slane %v284, %v292
      %v294 = vcombine.low %v289, %v293
      %295 = vrot.lane.b32.xlu0 %v294, 127
      %v296 = vpop.permute.xlu0 %295
      %v297 = vrot.slane %v296, 4
      %vm298 = vcmask 1039360
      %v299 = vsel %vm298, %v296, %v297
      %v301 = vmul.f32 %v283, %v299
      %v303 = vcombine.low %v301, %v301
      %304 = vrot.lane.b32.xlu0 %v303, 1
      %v305 = vpop.permute.xlu0 %304
      %306 = vrot.lane.b32.xlu0 %v301, 1
      %v307 = vpop.permute.xlu0 %306
      %vm308 = vcmask 7168
      %v309 = vsel %vm308, %v305, %v307
      %vm312 = vcmask 1047564
      %313 = vst.msk [vmem:[#allocation2 + $0x10] sm:$0xf0] %vm312, %v305
      %314 = vst [vmem:[#allocation2 + $0x18] sm:$0xf0] %v309
      %vm315 = vcmask 7172
      %316 = vst.msk [vmem:[#allocation2 + $0x10] sm:$0xf0] %vm315, 0.0
      %v317 = vld [vmem:[%s192] sm:$0xff]
      %v319 = vcombine.high %v317, %v317
      %321 = vst [vmem:[#allocation2 + $0x20] sm:$0xf] %v317
      %322 = vst [vmem:[#allocation2 + $0x28] sm:$0xf] %v319
      %v323 = vld [vmem:[%s192] sm:$0xff]
      %v324 = vld [vmem:[%s249] sm:$0x3]
      %v326 = vlaneseq
      %v327 = vshrl.u32 %v326, 7
      %v328 = vsub.s32 0, %v327
      %v329 = vrot.slane %v324, %v328
      %v330 = vlaneseq
      %v331 = vshrl.u32 %v330, 7
      %v332 = vsub.s32 1, %v331
      %v333 = vrot.slane %v324, %v332
      %v334 = vcombine.low %v329, %v333
      %335 = vrot.lane.b32.xlu0 %v334, 1
      %v336 = vpop.permute.xlu0 %335
      %v337 = vrot.slane %v336, 4
      %v338 = vsel %vm308, %v337, %v336
      %v340 = vmul.f32 %v323, %v338
      %v342 = vcombine.low %v340, %v340
      %343 = vrot.lane.b32.xlu0 %v342, 127
      %v344 = vpop.permute.xlu0 %343
      %345 = vrot.lane.b32.xlu0 %v340, 127
      %v346 = vpop.permute.xlu0 %345
      %v347 = vsel %vm298, %v344, %v346
      %350 = vst [vmem:[#allocation2 + $0x20] sm:$0xf0] %v347
      %vm351 = vcmask 1039364
      %352 = vst.msk [vmem:[#allocation2 + $0x28] sm:$0xf0] %vm351, %v346
      %vm353 = vcmask 1048572
      %354 = vst.msk [vmem:[#allocation2 + $0x28] sm:$0xf0] %vm353, 0.0
      %v355 = vld [vmem:[%s192] sm:$0xff]
      %v356 = vld [vmem:[%s3] sm:$0x3]
      %v358 = vlaneseq
      %v359 = vshrl.u32 %v358, 7
      %v360 = vsub.s32 0, %v359
      %v361 = vrot.slane %v356, %v360
      %v362 = vlaneseq
      %v363 = vshrl.u32 %v362, 7
      %v364 = vsub.s32 1, %v363
      %v365 = vrot.slane %v356, %v364
      %v366 = vcombine.low %v361, %v365
      %367 = vrot.lane.b32.xlu0 %v366, 15
      %v368 = vpop.permute.xlu0 %367
      %v369 = vrot.slane %v368, 4
      %v370 = vsel %vm274, %v369, %v368
      %v372 = vmul.f32 %v355, %v370
      %v374 = vcombine.high %v372, %v372
      %375 = vrot.lane.b32.xlu0 %v372, 113
      %v376 = vpop.permute.xlu0 %375
      %377 = vrot.lane.b32.xlu0 %v374, 113
      %v378 = vpop.permute.xlu0 %377
      %v379 = vsel %vm264, %v376, %v378
      %382 = vst [vmem:[#allocation2 + $0x30] sm:$0xf] %v379
      %vm383 = vcmask 920576
      %384 = vst.msk [vmem:[#allocation2 + $0x38] sm:$0xf] %vm383, %v378
      %vm385 = vcmask 1044360
      %386 = vst.msk [vmem:[#allocation2 + $0x38] sm:$0xf] %vm385, 0.0
      %v387 = vld [vmem:[%s192] sm:$0xff]
      %v389 = vcombine.low %v387, %v387
      %390 = vrot.lane.b32.xlu0 %v389, 112
      %v391 = vpop.permute.xlu0 %390
      %392 = vrot.lane.b32.xlu0 %v387, 112
      %v393 = vpop.permute.xlu0 %392
      %vm394 = vcmask 916480
      %v395 = vsel %vm394, %v391, %v393
      %398 = vst [vmem:[#allocation2 + $0x30] sm:$0xf0] %v395
      %vm399 = vcmask 916484
      %400 = vst.msk [vmem:[#allocation2 + $0x38] sm:$0xf0] %vm399, %v393
      %vm401 = vcmask 1048452
      %402 = vst.msk [vmem:[#allocation2 + $0x38] sm:$0xf0] %vm401, 0.0
      %v403 = vld [vmem:[%s192] sm:$0xff]
      %v404 = vld [vmem:[%s249] sm:$0x3]
      %v406 = vlaneseq
      %v407 = vshrl.u32 %v406, 7
      %v408 = vsub.s32 0, %v407
      %v409 = vrot.slane %v404, %v408
      %v410 = vlaneseq
      %v411 = vshrl.u32 %v410, 7
      %v412 = vsub.s32 1, %v411
      %v413 = vrot.slane %v404, %v412
      %v414 = vcombine.low %v409, %v413
      %415 = vrot.lane.b32.xlu0 %v414, 17
      %v416 = vpop.permute.xlu0 %415
      %v417 = vrot.slane %v416, 4
      %v418 = vsel %vm223, %v417, %v416
      %v420 = vmul.f32 %v403, %v418
      %v422 = vcombine.high %v420, %v420
      %423 = vrot.lane.b32.xlu0 %v420, 111
      %v424 = vpop.permute.xlu0 %423
      %425 = vrot.lane.b32.xlu0 %v422, 111
      %v426 = vpop.permute.xlu0 %425
      %v427 = vsel %vm213, %v424, %v426
      %430 = vst [vmem:[#allocation2 + $0x40] sm:$0xf] %v427
      %vm431 = vcmask 904192
      %432 = vst.msk [vmem:[#allocation2 + $0x48] sm:$0xf] %vm431, %v426
      %vm433 = vcmask 1044344
      %434 = vst.msk [vmem:[#allocation2 + $0x48] sm:$0xf] %vm433, 0.0
      %v435 = vld [vmem:[%s1] sm:$0xff]
      %v436 = vld [vmem:[#allocation2] sm:$0xff]
      %v437 = vld [vmem:[#allocation2 + $0x8] sm:$0xff]
      %v438 = vld [vmem:[#allocation2 + $0x10] sm:$0xff]
      %v439 = vld [vmem:[#allocation2 + $0x18] sm:$0xff]
      %v440 = vld [vmem:[#allocation2 + $0x20] sm:$0xff]
      %v441 = vld [vmem:[#allocation2 + $0x28] sm:$0xff]
      %v442 = vld [vmem:[#allocation2 + $0x30] sm:$0xff]
      %v443 = vld [vmem:[#allocation2 + $0x38] sm:$0xff]
      %v444 = vld [vmem:[#allocation2 + $0x40] sm:$0xf]
      %v445 = vld [vmem:[#allocation2 + $0x48] sm:$0xf]
      %v446 = vld [vmem:[%s2] sm:$0xff]
      %448 = vset.pattern.permute.xlu0 0
      %449 = vperm.xlu0 %448, %v446
      %v450 = vpop.permute.xlu0 %449
      %vm452 = vcmask 293888
      %v454 = vsel %vm452, %v435, 0
      %vm456 = vcmask 1043456
      %v458 = vsel %vm456, %v444, 0
      %v461 = vsel %vm456, %v445, 0
      %463 = vmatprep.subr.mxu0 %v437
      %464 = vmatpush1.msra.mxu0 %v436
      %465 = vmatprep.subr.mxu0 %v439
      %466 = vmatpush1.msra.mxu0 %v438
      %467 = vmatprep.subr.mxu0 %v441
      %468 = vmatpush1.msra.mxu0 %v440
      %469 = vmatprep.subr.mxu0 %v443
      %470 = vmatpush1.msra.mxu0 %v442
      %471 = vmatprep.subr.mxu0 %v461
      %472 = vmatpush1.msra.mxu0 %v458
      %473 = vmatprep.subr.mxu0 0.0
      %474 = vmatpush1.msra.mxu0 0.0
      %475 = vmatprep.subr.mxu0 0.0
      %476 = vmatpush1.msra.mxu0 0.0
      %477 = vmatprep.subr.mxu0 0.0
      %478 = vmatpush1.msra.mxu0 0.0
      %479 = vmatprep.subr.mxu0 0.0
      %480 = vmatpush1.msra.mxu0 0.0
      %481 = vmatprep.subr.mxu0 0.0
      %482 = vmatpush1.msra.mxu0 0.0
      %483 = vmatprep.subr.mxu0 0.0
      %484 = vmatpush1.msra.mxu0 0.0
      %485 = vmatprep.subr.mxu0 0.0
      %486 = vmatpush1.msra.mxu0 0.0
      %487 = vmatprep.subr.mxu0 0.0
      %488 = vmatpush1.msra.mxu0 0.0
      %489 = vmatprep.subr.mxu0 0.0
      %490 = vmatpush1.msra.mxu0 0.0
      %491 = vmatprep.subr.mxu0 0.0
      %492 = vmatpush1.msra.mxu0 0.0
      %493 = vmatprep.subr.mxu0 0.0
      %494 = vmatpush1.msra.mxu0 0.0
      %495 = vmatprep.subr.mxu0 0.0
      %496 = vmatpush1.msra.mxu0 0.0
      %497 = vmatprep.subr.mxu0 0.0
      %498 = vmatpush1.msra.mxu0 0.0
      %499 = vmatprep.subr.mxu0 0.0
      %500 = vmatpush1.msra.mxu0 0.0
      %501 = vmatprep.subr.mxu0 0.0
      %502 = vmatpush1.msra.mxu0 0.0
      %503 = vmatprep.subr.mxu0 0.0
      %504 = vmatpush1.msra.mxu0 0.0
      %505 = vmatprep.subr.mxu0 0.0
      %506 = vmatpush1.msra.mxu0 0.0
      %507 = vmatprep.subr.mxu0 0.0
      %508 = vmatpush1.msra.mxu0 0.0
      %509 = vmatprep.subr.mxu0 0.0
      %510 = vmatpush1.msra.mxu0 0.0
      %511 = vmatprep.subr.mxu0 0.0
      %512 = vmatpush1.msra.mxu0 0.0
      %513 = vmatprep.subr.mxu0 0.0
      %514 = vmatpush1.msra.mxu0 0.0
      %515 = vmatprep.subr.mxu0 0.0
      %516 = vmatpush1.msra.mxu0 0.0
      %517 = vmatprep.subr.mxu0 0.0
      %518 = vmatpush1.msra.mxu0 0.0
      %519 = vmatprep.subr.mxu0 0.0
      %520 = vmatpush1.msra.mxu0 0.0
      %521 = vmatprep.subr.mxu0 0.0
      %522 = vmatpush1.msra.mxu0 0.0
      %523 = vmatprep.subr.mxu0 0.0
      %524 = vmatpush1.msra.mxu0 0.0
      %525 = vmatprep.subr.mxu0 0.0
      %526 = vmatpush1.msra.mxu0 0.0
      %527 = vmatprep.mubr.f32.mxu0 0.0
      %528 = vmatmul.mubr.f32.gmra.mrb[0].mxu0 %v454
      %v529 = vpop.f32.mrb[0].mxu0
      %v530 = vadd.f32 %v450, %v529
      %v531 = vpop.f32.mrb[0].mxu0
      %v532 = vadd.f32 %v450, %v531
      %533 = vdwg.mxu0
      %v534 = vmul.f32 %v530, 0.5
      %v535 = vmul.f32 %v532, 0.5
      %v536 = vmul.f32 %v530, 0.70710677
      %v537 = vmul.f32 %v532, 0.70710677
      %v538 = verf.f32.pop %v536
      %v539 = verf.f32.pop %v537
      %v540 = vadd.f32 %v538, 1.0
      %v541 = vadd.f32 %v539, 1.0
      %v542 = vmul.f32 %v534, %v540
      %v543 = vmul.f32 %v535, %v541
      %544 = vst [vmem:[%s197] sm:$0xff] %v542
      %545 = vst [vmem:[%s197 + $0x8] sm:$0xff] %v543
      %p546 = scmp.lt.s32.totalorder %s15, 1
      %s547 = scalar_select %p546, %s15, 1
      %s548 = smul.addr %s547, 2
      %s549 = smul.addr %s548, 8
      %s550 = scalar_lea.vmem %s4, %s549
      // Predicated region
      $region37: #{encoder1_conv.1} parent=35 // pred_check
        %p551 = pneg %p122
      $region38: #{encoder1_conv.1} parent=35 // pred_check_branch
        %553 = sbr.rel (%p551) target = $region40
      $region39: #{encoder1_conv.1} parent=35 // pred_region
        _
      $region40: #{encoder1_conv.1} parent=35 // pred_fallthru
        _
    $region36: #{encoder1_conv.1} parent=5 // pred_fallthru
      _
    %p554 = scmp.le.s32.totalorder 2, %s10
    // Predicated region
    $region41: #{encoder1_conv.1} parent=5 // pred_check
      %p555 = pneg %p554
    $region42: #{encoder1_conv.1} parent=5 // pred_check_branch
      %557 = sbr.rel (%p555) target = $region44
    $region43: #{encoder1_conv.1} parent=5 // pred_region
      %s558 = ssub.s32 %s10, 2
      // Predicated region
      $region45: #{encoder1_conv.1} parent=43 // pred_check
        %p559 = pneg %p128
      $region46: #{encoder1_conv.1} parent=43 // pred_check_branch
        %561 = sbr.rel (%p559) target = $region48
      $region47: #{encoder1_conv.1} parent=43 // pred_region
        %p562 = scmp.lt.s32.totalorder %s16, 1
        %s563 = scalar_select %p562, %s16, 1
        %s564 = smul.addr %s563, 2
        %s565 = smul.addr %s564, 8
        %s566 = scalar_lea.vmem %s4, %s565
      $region48: #{encoder1_conv.1} parent=43 // pred_fallthru
        _
    $region44: #{encoder1_conv.1} parent=5 // pred_fallthru
      _
  $region6: #{encoder1_conv.1} parent=0 // loop_footer
    %s14 = sadd.s32 1, %s10
  $region7: #{encoder1_conv.1} parent=0 // loop_footer_branch
    %9 = sbr.rel target = $region3
  $region8: #{encoder1_conv.1} parent=0 // loop_exit
    _

</llo_original>
